<compile_context>
chip_gen: v5e
topology: v5e:2x2
jax: 0.10.0
libtpu: 0.0.40
codegen_flags: <defaults>
</compile_context>

<pallas_src>
from functools import partial

import jax
import jax.numpy as jnp
from jax import lax
from jax.experimental import pallas as pl
from jax.experimental.pallas import tpu as pltpu


def _attn_kernel(x_ref, wq_ref, wkv_ref, wout_ref, bias_ref, o_ref, *,
                 heads, dim_head, q_tile):
    # x_ref block: (1, C, N) in native channel-major layout.
    x = x_ref[0]                                                    # (C, N) f32
    c, n = x.shape
    hidden = heads * dim_head

    # ---- K/V projection over the full sequence (channel-major matmul). ----
    # wkv: (2*hidden, C)  ->  kv: (2*hidden, N)
    kv = jnp.dot(wkv_ref[...], x, preferred_element_type=jnp.float32)
    k = kv[:hidden].reshape(heads, dim_head, n)                     # (H, Dh, N)
    v = kv[hidden:].reshape(heads, dim_head, n)                     # (H, Dh, N)

    # ---- Q projection for this query tile only, head-batched. ----
    if q_tile == n:
        x_q = x                                                     # (C, TQ)
    else:
        start = pl.multiple_of(pl.program_id(1) * q_tile, q_tile)
        x_q = lax.dynamic_slice_in_dim(x, start, q_tile, axis=1)    # (C, TQ)
    x_qt = jnp.transpose(x_q)                                       # (TQ, C) — only in-kernel transpose
    x_qb = jnp.broadcast_to(x_qt, (heads, q_tile, c))               # (H, TQ, C)
    # wq: (H, C, Dh), softmax scale pre-folded by the wrapper.
    q = lax.dot_general(x_qb, wq_ref[...],
                        dimension_numbers=(((2,), (1,)), ((0,), (0,))),
                        preferred_element_type=jnp.float32)         # (H, TQ, Dh)

    # ---- Attention: heads batched on the MXU, bf16 operands / f32 accumulate. ----
    qb = q.astype(jnp.bfloat16)
    kb = k.astype(jnp.bfloat16)
    vb = v.astype(jnp.bfloat16)

    # sim[h, i, j] = sum_d q[h, i, d] * k[h, d, j]      (standard batched NN)
    sim = lax.dot_general(qb, kb,
                          dimension_numbers=(((2,), (1,)), ((0,), (0,))),
                          preferred_element_type=jnp.float32)       # (H, TQ, N)
    sim = sim - jnp.max(sim, axis=-1, keepdims=True)
    p = jnp.exp(sim)
    attn = p * pl.reciprocal(jnp.sum(p, axis=-1, keepdims=True), approx=True)

    # out[h, d, i] = sum_j v[h, d, j] * attn[h, i, j]   (contract last dims, batch h)
    out = lax.dot_general(vb, attn.astype(jnp.bfloat16),
                          dimension_numbers=(((2,), (2,)), ((0,), (0,))),
                          preferred_element_type=jnp.float32)       # (H, Dh, TQ)

    # rearrange 'h d n -> (h d) n' is just a merge of the leading dims.
    out_flat = out.reshape(hidden, q_tile)                          # (hidden, TQ)

    # ---- Output projection (1x1 conv) + bias; lane-dense (C, TQ) store. ----
    y = jnp.dot(wout_ref[...], out_flat, preferred_element_type=jnp.float32)
    y = y + bias_ref[...]                                           # (C, 1) broadcast over N
    o_ref[0] = y.astype(o_ref.dtype)


def attention_forward(x, w_qkv, w_out, b_out, *, heads, dim_head, q_tile=None):
    """x: (B, C, N). w_qkv: (3*H*Dh, C) conv weight. w_out: (C, H*Dh). b_out: (C,)."""
    b, c, n = x.shape
    hidden = heads * dim_head
    scale = dim_head ** -0.5

    # Fold the softmax scale into the Q projection weight (free at runtime) and
    # pre-arrange it head-major: (H, C, Dh).
    w_q = (w_qkv[:hidden] * scale).reshape(heads, dim_head, c)
    w_q = jnp.transpose(w_q, (0, 2, 1))                             # (H, C, Dh)
    w_kv = w_qkv[hidden:]                                           # (2*hidden, C)
    bias = b_out.reshape(c, 1)

    if q_tile is None:
        q_tile = 128 if (n % 128 == 0) else n
    n_q = n // q_tile

    kernel = partial(_attn_kernel, heads=heads, dim_head=dim_head, q_tile=q_tile)
    return pl.pallas_call(
        kernel,
        out_shape=jax.ShapeDtypeStruct((b, c, n), x.dtype),
        grid_spec=pltpu.PrefetchScalarGridSpec(
            num_scalar_prefetch=0,
            grid=(b, n_q),
            in_specs=[
                pl.BlockSpec((1, c, n), lambda bi, qi: (bi, 0, 0)),   # full seq (for K/V)
                pl.BlockSpec(w_q.shape, lambda bi, qi: (0, 0, 0)),
                pl.BlockSpec(w_kv.shape, lambda bi, qi: (0, 0)),
                pl.BlockSpec(w_out.shape, lambda bi, qi: (0, 0)),
                pl.BlockSpec(bias.shape, lambda bi, qi: (0, 0)),
            ],
            out_specs=pl.BlockSpec((1, c, q_tile), lambda bi, qi: (bi, 0, qi)),
        ),
        compiler_params=pltpu.CompilerParams(
            dimension_semantics=("parallel", "parallel")),
    )(x, w_q, w_kv, w_out, bias)


def _reference_forward(x, w_qkv, w_out, b_out, *, heads, dim_head):
    """Pure-JAX (f32) reference mirroring the PyTorch forward exactly."""
    b, c, n = x.shape
    hidden = heads * dim_head
    scale = dim_head ** -0.5
    qkv = jnp.einsum('oc,bcn->bon', w_qkv, x)                       # (B, 3*hidden, N)
    q, k, v = jnp.split(qkv, 3, axis=1)
    rs = lambda t: t.reshape(b, heads, dim_head, n)                 # 'b (h c) n -> b h c n'
    q, k, v = rs(q), rs(k), rs(v)
    q = q * scale
    sim = jnp.einsum('bhdi,bhdj->bhij', q, k)
    attn = jax.nn.softmax(sim, axis=-1)
    out = jnp.einsum('bhij,bhdj->bhid', attn, v)                    # (B, H, N, Dh)
    out = jnp.transpose(out, (0, 1, 3, 2)).reshape(b, hidden, n)    # 'b h n d -> b (h d) n'
    return jnp.einsum('oc,bcn->bon', w_out, out) + b_out[None, :, None]


if __name__ == "__main__":
    B, DIM, N = 2, 8, 16
    HEADS, DIM_HEAD = 4, 32
    HIDDEN = HEADS * DIM_HEAD

    key = jax.random.PRNGKey(0)
    kx, kq, ko, kb = jax.random.split(key, 4)

    x = jax.random.normal(kx, (B, DIM, N), dtype=jnp.float32)

    # Conv1d-shaped weights (kernel-size-1 dim squeezed): (out_ch, in_ch).
    w_qkv = jax.random.normal(kq, (3 * HIDDEN, DIM), jnp.float32) * (DIM ** -0.5)
    w_out = jax.random.normal(ko, (DIM, HIDDEN), jnp.float32) * (HIDDEN ** -0.5)
    b_out = jax.random.normal(kb, (DIM,), jnp.float32) * 0.01

    y = attention_forward(x, w_qkv, w_out, b_out, heads=HEADS, dim_head=DIM_HEAD)
    y = jax.block_until_ready(y)

    y_ref = _reference_forward(x, w_qkv, w_out, b_out, heads=HEADS, dim_head=DIM_HEAD)
    assert y.shape == (B, DIM, N)
    # bf16 MXU operands (f32 accumulation) in the attention path -> loosened tolerance.
    assert jnp.allclose(y, y_ref, atol=5e-2, rtol=5e-2), "mismatch vs reference"

    print("KERNEL_OK")
</pallas_src>

<mosaic_0001>
module attributes {stable_mosaic.version = 11 : i64} {
  func.func @_attn_kernel(%arg0: i32, %arg1: i32, %arg2: memref<1x8x16xf32, #tpu.memory_space<vmem>>, %arg3: memref<4x8x32xf32, #tpu.memory_space<vmem>>, %arg4: memref<256x8xf32, #tpu.memory_space<vmem>>, %arg5: memref<8x128xf32, #tpu.memory_space<vmem>>, %arg6: memref<8x1xf32, #tpu.memory_space<vmem>>, %arg7: memref<1x8x16xf32, #tpu.memory_space<vmem>>) attributes {dimension_semantics = [#tpu.dimension_semantics<parallel>, #tpu.dimension_semantics<parallel>], iteration_bounds = array<i64: 2, 1>, scalar_prefetch = 0 : i64, scratch_operands = 0 : i64, tpu.core_type = #tpu.core_type<tc>, window_params = [{transform_indices = @transform_0, window_bounds = array<i64: 1, 8, 16>}, {pipeline_mode = #tpu.pipeline_mode<synchronous>, transform_indices = @transform_1, window_bounds = array<i64: 4, 8, 32>}, {pipeline_mode = #tpu.pipeline_mode<synchronous>, transform_indices = @transform_2, window_bounds = array<i64: 256, 8>}, {pipeline_mode = #tpu.pipeline_mode<synchronous>, transform_indices = @transform_3, window_bounds = array<i64: 8, 128>}, {pipeline_mode = #tpu.pipeline_mode<synchronous>, transform_indices = @transform_4, window_bounds = array<i64: 8, 1>}, {transform_indices = @transform_5, window_bounds = array<i64: 1, 8, 16>}]} {
    %c0 = arith.constant 0 : index
    %c0_0 = arith.constant 0 : index
    %c0_1 = arith.constant 0 : index
    %0 = vector.load %arg2[%c0, %c0_0, %c0_1] : memref<1x8x16xf32, #tpu.memory_space<vmem>>, vector<1x8x16xf32>
    %1 = vector.shape_cast %0 : vector<1x8x16xf32> to vector<8x16xf32>
    %c0_2 = arith.constant 0 : index
    %c0_3 = arith.constant 0 : index
    %2 = vector.load %arg4[%c0_2, %c0_3] : memref<256x8xf32, #tpu.memory_space<vmem>>, vector<256x8xf32>
    %cst = arith.constant dense<0.000000e+00> : vector<256x16xf32>
    %3 = tpu.matmul %2, %1, %cst {dimension_numbers = #tpu.dot_dimension_numbers<[1], [0], [0], [1], [0, 0, 1, 1], [], []>} : vector<256x8xf32>, vector<8x16xf32>, vector<256x16xf32> -> vector<256x16xf32>
    %4 = vector.extract_strided_slice %3 {offsets = [0, 0], sizes = [128, 16], strides = [1, 1]} : vector<256x16xf32> to vector<128x16xf32>
    %5 = vector.shape_cast %4 : vector<128x16xf32> to vector<4x32x16xf32>
    %6 = vector.extract_strided_slice %3 {offsets = [128, 0], sizes = [128, 16], strides = [1, 1]} : vector<256x16xf32> to vector<128x16xf32>
    %7 = vector.shape_cast %6 : vector<128x16xf32> to vector<4x32x16xf32>
    %8 = tpu.transpose %1, [1, 0] : vector<8x16xf32> -> vector<16x8xf32>
    %9 = vector.shape_cast %8 : vector<16x8xf32> to vector<1x16x8xf32>
    %10 = vector.broadcast %9 : vector<1x16x8xf32> to vector<4x16x8xf32>
    %c0_4 = arith.constant 0 : index
    %c0_5 = arith.constant 0 : index
    %c0_6 = arith.constant 0 : index
    %11 = vector.load %arg3[%c0_4, %c0_5, %c0_6] : memref<4x8x32xf32, #tpu.memory_space<vmem>>, vector<4x8x32xf32>
    %cst_7 = arith.constant dense<0.000000e+00> : vector<4x16x32xf32>
    %12 = tpu.matmul %10, %11, %cst_7 {dimension_numbers = #tpu.dot_dimension_numbers<[2], [1], [1], [2], [0, 0, 0, 1, 1, 2], [0], [0]>} : vector<4x16x8xf32>, vector<4x8x32xf32>, vector<4x16x32xf32> -> vector<4x16x32xf32>
    %13 = arith.truncf %12 : vector<4x16x32xf32> to vector<4x16x32xbf16>
    %14 = arith.truncf %5 : vector<4x32x16xf32> to vector<4x32x16xbf16>
    %15 = arith.truncf %7 : vector<4x32x16xf32> to vector<4x32x16xbf16>
    %cst_8 = arith.constant dense<0.000000e+00> : vector<4x16x16xf32>
    %16 = tpu.matmul %13, %14, %cst_8 {dimension_numbers = #tpu.dot_dimension_numbers<[2], [1], [1], [2], [0, 0, 0, 1, 1, 2], [0], [0]>} : vector<4x16x32xbf16>, vector<4x32x16xbf16>, vector<4x16x16xf32> -> vector<4x16x16xf32>
    %cst_9 = arith.constant dense<0xFF800000> : vector<4x16xf32>
    %17 = vector.multi_reduction <maximumf>, %16, %cst_9 [2] : vector<4x16x16xf32> to vector<4x16xf32>
    %18 = vector.shape_cast %17 : vector<4x16xf32> to vector<4x16x1xf32>
    %19 = vector.broadcast %18 : vector<4x16x1xf32> to vector<4x16x16xf32>
    %20 = arith.subf %16, %19 : vector<4x16x16xf32>
    %21 = math.exp %20 : vector<4x16x16xf32>
    %cst_10 = arith.constant dense<0.000000e+00> : vector<4x16xf32>
    %22 = vector.multi_reduction <add>, %21, %cst_10 [2] : vector<4x16x16xf32> to vector<4x16xf32>
    %23 = vector.shape_cast %22 : vector<4x16xf32> to vector<4x16x1xf32>
    %24 = tpu.reciprocal %23 {approx = true} : vector<4x16x1xf32> -> vector<4x16x1xf32>
    %25 = vector.broadcast %24 : vector<4x16x1xf32> to vector<4x16x16xf32>
    %26 = arith.mulf %21, %25 : vector<4x16x16xf32>
    %27 = arith.truncf %26 : vector<4x16x16xf32> to vector<4x16x16xbf16>
    %cst_11 = arith.constant dense<0.000000e+00> : vector<4x32x16xf32>
    %28 = tpu.matmul %15, %27, %cst_11 {dimension_numbers = #tpu.dot_dimension_numbers<[2], [2], [1], [1], [0, 0, 0, 1, 1, 1], [0], [0]>} : vector<4x32x16xbf16>, vector<4x16x16xbf16>, vector<4x32x16xf32> -> vector<4x32x16xf32>
    %29 = vector.shape_cast %28 : vector<4x32x16xf32> to vector<128x16xf32>
    %c0_12 = arith.constant 0 : index
    %c0_13 = arith.constant 0 : index
    %30 = vector.load %arg5[%c0_12, %c0_13] : memref<8x128xf32, #tpu.memory_space<vmem>>, vector<8x128xf32>
    %cst_14 = arith.constant dense<0.000000e+00> : vector<8x16xf32>
    %31 = tpu.matmul %30, %29, %cst_14 {dimension_numbers = #tpu.dot_dimension_numbers<[1], [0], [0], [1], [0, 0, 1, 1], [], []>} : vector<8x128xf32>, vector<128x16xf32>, vector<8x16xf32> -> vector<8x16xf32>
    %c0_15 = arith.constant 0 : index
    %c0_16 = arith.constant 0 : index
    %32 = vector.load %arg6[%c0_15, %c0_16] : memref<8x1xf32, #tpu.memory_space<vmem>>, vector<8x1xf32>
    %33 = vector.broadcast %32 : vector<8x1xf32> to vector<8x16xf32>
    %34 = arith.addf %31, %33 : vector<8x16xf32>
    %c0_17 = arith.constant 0 : index
    %c0_18 = arith.constant 0 : index
    %c0_19 = arith.constant 0 : index
    %35 = vector.load %arg7[%c0_17, %c0_18, %c0_19] : memref<1x8x16xf32, #tpu.memory_space<vmem>>, vector<1x8x16xf32>
    %36 = vector.shape_cast %35 : vector<1x8x16xf32> to vector<8x16xf32>
    %37 = vector.shape_cast %34 : vector<8x16xf32> to vector<1x8x16xf32>
    tpu.vector_store %arg7[%c0_17, %c0_18, %c0_19], %37 {strides = array<i32>} : memref<1x8x16xf32, #tpu.memory_space<vmem>>, vector<1x8x16xf32>,
    return
  }
  func.func @transform_0(%arg0: i32, %arg1: i32) -> (i32, i32, i32) {
    %c0_i32 = arith.constant 0 : i32
    %c0_i32_0 = arith.constant 0 : i32
    %c0_i32_1 = arith.constant 0 : i32
    return %arg0, %c0_i32, %c0_i32_0 : i32, i32, i32
  }
  func.func @transform_1(%arg0: i32, %arg1: i32) -> (i32, i32, i32) {
    %c0_i32 = arith.constant 0 : i32
    %c0_i32_0 = arith.constant 0 : i32
    %c0_i32_1 = arith.constant 0 : i32
    %c0_i32_2 = arith.constant 0 : i32
    return %c0_i32, %c0_i32_0, %c0_i32_1 : i32, i32, i32
  }
  func.func @transform_2(%arg0: i32, %arg1: i32) -> (i32, i32) {
    %c0_i32 = arith.constant 0 : i32
    %c0_i32_0 = arith.constant 0 : i32
    %c0_i32_1 = arith.constant 0 : i32
    return %c0_i32, %c0_i32_0 : i32, i32
  }
  func.func @transform_3(%arg0: i32, %arg1: i32) -> (i32, i32) {
    %c0_i32 = arith.constant 0 : i32
    %c0_i32_0 = arith.constant 0 : i32
    %c0_i32_1 = arith.constant 0 : i32
    return %c0_i32, %c0_i32_0 : i32, i32
  }
  func.func @transform_4(%arg0: i32, %arg1: i32) -> (i32, i32) {
    %c0_i32 = arith.constant 0 : i32
    %c0_i32_0 = arith.constant 0 : i32
    %c0_i32_1 = arith.constant 0 : i32
    return %c0_i32, %c0_i32_0 : i32, i32
  }
  func.func @transform_5(%arg0: i32, %arg1: i32) -> (i32, i32, i32) {
    %c0_i32 = arith.constant 0 : i32
    %c0_i32_0 = arith.constant 0 : i32
    return %arg0, %c0_i32, %arg1 : i32, i32, i32
  }
}

</mosaic_0001>

<llo_original>
// kernel: tpu_custom_call.1
$region0: #{tpu_custom_call.1}
  #allocation0 [shape = 'u32[]', space=smem, size = 0x4, offset = 0x4, fixed_abs, tag = 'smem constant byte address 0x4 - core index']
  #allocation1 [shape = 'u32[72,128]{1,0:T(1,128)}', space=vmem, size = 0x9000, scoped, tag = 'internal scratch']
  %s0 = inlined_call_operand.vmem [shape: f32[2,8,16], index: 0, kind: input, shape index: {}]
  %s1 = inlined_call_operand.vmem [shape: f32[4,8,32], index: 1, kind: input, shape index: {}]
  %s2 = inlined_call_operand.vmem [shape: f32[256,8], index: 2, kind: input, shape index: {}]
  %s3 = inlined_call_operand.vmem [shape: f32[8,128], index: 3, kind: input, shape index: {}]
  %s4 = inlined_call_operand.vmem [shape: f32[8,1], index: 4, kind: input, shape index: {}]
  %s5 = inlined_call_operand.hbm [shape: f32[2,8,16], index: 5, kind: output, shape index: {}]
  %s6 = sld [smem:[#allocation0]]
  $region53: #{tpu_custom_call.1} parent=0
    _
  %s8 = ssub.s32 1, %s6
  %s9 = scalar_select 0, %s8, %s6
  $region1: #{tpu_custom_call.1} parent=0
    #allocation2 [shape = 'u8[8192]{0}', space=vmem, size = 0x2000, scoped, tag = 'output window, operand 0']
    #allocation3 [shape = 's32[2]{0}', space=sflag, size = 0x8, scoped, tag = 'scoped memory for tpu_custom_call.1']
    %10 = vsyncpa [#allocation3], 0
    %s11 = scalar_lea.sflag [#allocation3], 1
    %12 = vsyncpa %s11, 0
    loop: start=0, step=1, limit=4
    $region2: #{tpu_custom_call.1} parent=1 // loop_pre_header
      _
    $region3: #{tpu_custom_call.1} parent=1 // loop_header
      %s14 = sphi 0, %s18
      %p15 = scmp.ge.s32.totalorder %s14, 4
      %s21 = sphi 0, %s33
      %s22 = sphi 0, %s29
      %s23 = sphi 0, %s21
      %s24 = sphi 0, %s22
      %s25 = sphi 0, %s23
      %s26 = sphi 0, %s24
      %s36 = sphi 0, %s38
      %s39 = sphi 0, %s36
      %s40 = sphi 0, %s39
      %s56 = sphi 0, %s40
      %s60 = sphi 0, %s60
      %s62 = sphi 0, %s60
      %s63 = sphi 0, %s62
      %s77 = sphi 0, %s63
      %s81 = sphi 0, %s81
      %s83 = sphi 0, %s81
      %s84 = sphi 0, %s83
      %s98 = sphi 0, %s84
      %s102 = sphi 0, %s102
      %s104 = sphi 0, %s102
      %s105 = sphi 0, %s104
      %s119 = sphi 0, %s105
      %s123 = sphi 0, %s123
      %s125 = sphi 0, %s123
      %s126 = sphi 0, %s125
      %s140 = sphi 0, %s126
      %s148 = sphi 0, %s150
      %s151 = sphi 0, %s148
      %s152 = sphi 0, %s151
      %s168 = sphi 0, %s152
    $region4: #{tpu_custom_call.1} parent=1 // loop_header_branch
      %17 = sbr.rel (%p15) target = $region8
    $region5: #{tpu_custom_call.1} parent=1 // loop_body
      %s19 = ssub.s32 %s14, 1
      %s20 = ssub.s32 %s14, 2
      %s27 = sadd.s32 1, %s22
      %p28 = scmp.ge.s32.totalorder %s27, 1
      %s29 = scalar_select %p28, 0, %s27
      %s30 = sadd.s32 1, %s21
      %s31 = scalar_select %p28, %s30, %s21
      %p32 = scmp.ge.s32.totalorder %s31, 2
      %s33 = scalar_select %p32, 0, %s31
      %s34 = ssub.s32 %s21, %s33
      %p35 = scmp.eq.s32.totalorder %s34, 0
      %s37 = sadd.s32 %s36, 1
      %s38 = scalar_select %p35, %s36, %s37
      %p41 = pneg %p35
      %p42 = scmp.eq.s32.totalorder %s14, 1
      %p43 = por %p41, %p42
      %p44 = scmp.ne.s32.totalorder %s36, %s39
      %p45 = scmp.eq.s32.totalorder %s14, 0
      %p46 = por %p44, %p45
      %p47 = scmp.ne.s32.totalorder %s36, %s39
      %p48 = scmp.eq.s32.totalorder %s19, 1
      %p49 = por %p47, %p48
      %p50 = scmp.ne.s32.totalorder %s39, %s40
      %p51 = scmp.eq.s32.totalorder %s19, 0
      %p52 = por %p50, %p51
      %p53 = scmp.ne.s32.totalorder %s39, %s40
      %p54 = scmp.eq.s32.totalorder %s20, 1
      %p55 = por %p53, %p54
      %p57 = scmp.ne.s32.totalorder %s40, %s56
      %p58 = scmp.eq.s32.totalorder %s20, 0
      %p59 = por %p57, %p58
      %s61 = sadd.s32 %s60, 1
      %p64 = scmp.eq.s32.totalorder %s14, 1
      %p65 = scmp.ne.s32.totalorder %s60, %s62
      %p66 = scmp.eq.s32.totalorder %s14, 0
      %p67 = por %p65, %p66
      %p68 = scmp.ne.s32.totalorder %s60, %s62
      %p69 = scmp.eq.s32.totalorder %s19, 1
      %p70 = por %p68, %p69
      %p71 = scmp.ne.s32.totalorder %s62, %s63
      %p72 = scmp.eq.s32.totalorder %s19, 0
      %p73 = por %p71, %p72
      %p74 = scmp.ne.s32.totalorder %s62, %s63
      %p75 = scmp.eq.s32.totalorder %s20, 1
      %p76 = por %p74, %p75
      %p78 = scmp.ne.s32.totalorder %s63, %s77
      %p79 = scmp.eq.s32.totalorder %s20, 0
      %p80 = por %p78, %p79
      %s82 = sadd.s32 %s81, 1
      %p85 = scmp.eq.s32.totalorder %s14, 1
      %p86 = scmp.ne.s32.totalorder %s81, %s83
      %p87 = scmp.eq.s32.totalorder %s14, 0
      %p88 = por %p86, %p87
      %p89 = scmp.ne.s32.totalorder %s81, %s83
      %p90 = scmp.eq.s32.totalorder %s19, 1
      %p91 = por %p89, %p90
      %p92 = scmp.ne.s32.totalorder %s83, %s84
      %p93 = scmp.eq.s32.totalorder %s19, 0
      %p94 = por %p92, %p93
      %p95 = scmp.ne.s32.totalorder %s83, %s84
      %p96 = scmp.eq.s32.totalorder %s20, 1
      %p97 = por %p95, %p96
      %p99 = scmp.ne.s32.totalorder %s84, %s98
      %p100 = scmp.eq.s32.totalorder %s20, 0
      %p101 = por %p99, %p100
      %s103 = sadd.s32 %s102, 1
      %p106 = scmp.eq.s32.totalorder %s14, 1
      %p107 = scmp.ne.s32.totalorder %s102, %s104
      %p108 = scmp.eq.s32.totalorder %s14, 0
      %p109 = por %p107, %p108
      %p110 = scmp.ne.s32.totalorder %s102, %s104
      %p111 = scmp.eq.s32.totalorder %s19, 1
      %p112 = por %p110, %p111
      %p113 = scmp.ne.s32.totalorder %s104, %s105
      %p114 = scmp.eq.s32.totalorder %s19, 0
      %p115 = por %p113, %p114
      %p116 = scmp.ne.s32.totalorder %s104, %s105
      %p117 = scmp.eq.s32.totalorder %s20, 1
      %p118 = por %p116, %p117
      %p120 = scmp.ne.s32.totalorder %s105, %s119
      %p121 = scmp.eq.s32.totalorder %s20, 0
      %p122 = por %p120, %p121
      %s124 = sadd.s32 %s123, 1
      %p127 = scmp.eq.s32.totalorder %s14, 1
      %p128 = scmp.ne.s32.totalorder %s123, %s125
      %p129 = scmp.eq.s32.totalorder %s14, 0
      %p130 = por %p128, %p129
      %p131 = scmp.ne.s32.totalorder %s123, %s125
      %p132 = scmp.eq.s32.totalorder %s19, 1
      %p133 = por %p131, %p132
      %p134 = scmp.ne.s32.totalorder %s125, %s126
      %p135 = scmp.eq.s32.totalorder %s19, 0
      %p136 = por %p134, %p135
      %p137 = scmp.ne.s32.totalorder %s125, %s126
      %p138 = scmp.eq.s32.totalorder %s20, 1
      %p139 = por %p137, %p138
      %p141 = scmp.ne.s32.totalorder %s126, %s140
      %p142 = scmp.eq.s32.totalorder %s20, 0
      %p143 = por %p141, %p142
      %s144 = ssub.s32 %s21, %s33
      %s145 = ssub.s32 %s22, %s29
      %s146 = sor.u32 %s144, %s145
      %p147 = scmp.eq.s32.totalorder %s146, 0
      %s149 = sadd.s32 %s148, 1
      %s150 = scalar_select %p147, %s148, %s149
      %p153 = pneg %p147
      %p154 = scmp.eq.s32.totalorder %s14, 1
      %p155 = por %p153, %p154
      %p156 = scmp.ne.s32.totalorder %s148, %s151
      %p157 = scmp.eq.s32.totalorder %s14, 0
      %p158 = por %p156, %p157
      %p159 = scmp.ne.s32.totalorder %s148, %s151
      %p160 = scmp.eq.s32.totalorder %s19, 1
      %p161 = por %p159, %p160
      %p162 = scmp.ne.s32.totalorder %s151, %s152
      %p163 = scmp.eq.s32.totalorder %s19, 0
      %p164 = por %p162, %p163
      %p165 = scmp.ne.s32.totalorder %s151, %s152
      %p166 = scmp.eq.s32.totalorder %s20, 1
      %p167 = por %p165, %p166
      %p169 = scmp.ne.s32.totalorder %s152, %s168
      %p170 = scmp.eq.s32.totalorder %s20, 0
      %p171 = por %p169, %p170
      %p172 = scmp.le.s32.totalorder 1, %s14
      %p173 = scmp.lt.s32.totalorder %s14, 3
      %p174 = pnand %p172, %p173
      %p175 = pneg %p174
      // Predicated region
      $region9: #{tpu_custom_call.1} parent=5 // pred_check
        _
      $region10: #{tpu_custom_call.1} parent=5 // pred_check_branch
        %177 = sbr.rel (%p174) target = $region12
      $region11: #{tpu_custom_call.1} parent=5 // pred_region
        %s178 = ssub.s32 %s14, 1
        // Predicated region
        $region13: #{tpu_custom_call.1} parent=11 // pred_check
          %p179 = pneg %p73
        $region14: #{tpu_custom_call.1} parent=11 // pred_check_branch
          %181 = sbr.rel (%p179) target = $region16
        $region15: #{tpu_custom_call.1} parent=11 // pred_region
          _
        $region16: #{tpu_custom_call.1} parent=11 // pred_fallthru
          _
        // Predicated region
        $region17: #{tpu_custom_call.1} parent=11 // pred_check
          %p182 = pneg %p94
        $region18: #{tpu_custom_call.1} parent=11 // pred_check_branch
          %184 = sbr.rel (%p182) target = $region20
        $region19: #{tpu_custom_call.1} parent=11 // pred_region
          _
        $region20: #{tpu_custom_call.1} parent=11 // pred_fallthru
          _
        // Predicated region
        $region21: #{tpu_custom_call.1} parent=11 // pred_check
          %p185 = pneg %p115
        $region22: #{tpu_custom_call.1} parent=11 // pred_check_branch
          %187 = sbr.rel (%p185) target = $region24
        $region23: #{tpu_custom_call.1} parent=11 // pred_region
          _
        $region24: #{tpu_custom_call.1} parent=11 // pred_fallthru
          _
        // Predicated region
        $region25: #{tpu_custom_call.1} parent=11 // pred_check
          %p188 = pneg %p136
        $region26: #{tpu_custom_call.1} parent=11 // pred_check_branch
          %190 = sbr.rel (%p188) target = $region28
        $region27: #{tpu_custom_call.1} parent=11 // pred_region
          _
        $region28: #{tpu_custom_call.1} parent=11 // pred_fallthru
          _
      $region12: #{tpu_custom_call.1} parent=5 // pred_fallthru
        _
      %p191 = scmp.lt.s32.totalorder %s14, 2
      // Predicated region
      $region29: #{tpu_custom_call.1} parent=5 // pred_check
        %p192 = pneg %p191
      $region30: #{tpu_custom_call.1} parent=5 // pred_check_branch
        %194 = sbr.rel (%p192) target = $region32
      $region31: #{tpu_custom_call.1} parent=5 // pred_region
        // Predicated region
        $region33: #{tpu_custom_call.1} parent=31 // pred_check
          %p195 = pneg %p46
        $region34: #{tpu_custom_call.1} parent=31 // pred_check_branch
          %197 = sbr.rel (%p195) target = $region36
        $region35: #{tpu_custom_call.1} parent=31 // pred_region
          %p198 = scmp.lt.s32.totalorder %s21, 1
          %s199 = scalar_select %p198, %s21, 1
          %s200 = smul.addr %s199, 8
          %s201 = scalar_lea.vmem %s0, %s200
        $region36: #{tpu_custom_call.1} parent=31 // pred_fallthru
          _
      $region32: #{tpu_custom_call.1} parent=5 // pred_fallthru
        _
      %p202 = scmp.le.s32.totalorder 1, %s14
      %p203 = scmp.lt.s32.totalorder %s14, 3
      %p204 = pnand %p202, %p203
      %p205 = pneg %p204
      // Predicated region
      $region37: #{tpu_custom_call.1} parent=5 // pred_check
        _
      $region38: #{tpu_custom_call.1} parent=5 // pred_check_branch
        %207 = sbr.rel (%p204) target = $region40
      $region39: #{tpu_custom_call.1} parent=5 // pred_region
        %s208 = ssub.s32 %s14, 1
        %p209 = scmp.lt.s32.totalorder %s23, 1
        %s210 = scalar_select %p209, %s23, 1
        %s211 = smul.addr %s210, 8
        %s212 = scalar_lea.vmem %s0, %s211
        %p213 = pneg %p52
        %p214 = pneg %p49
        %p215 = pneg %p73
        %p216 = pneg %p70
        %p217 = pneg %p94
        %p218 = pneg %p91
        %p219 = pneg %p115
        %p220 = pneg %p112
        %p221 = pneg %p136
        %p222 = pneg %p133
        %p223 = pneg %p164
        %p224 = pneg %p161
        %s225 = sand.u32 %s151, 1
        %s226 = scalar_lea.sflag [#allocation3], %s225
        %s227 = sand.u32 %s151, 1
        %s228 = smul.addr %s227, 8
        %s229 = scalar_lea.vmem [#allocation2], %s228
        %p230 = scmp.lt.s32.totalorder %s23, 1
        %s231 = scalar_select %p230, %s23, 1
        %s232 = smul.addr %s231, 8
        %s233 = scalar_lea.vmem %s0, %s232
        %v235 = vld [vmem:[%s233] sm:$0xff]
        %v236 = vld [vmem:[%s2] sm:$0xff]
        %v237 = vld [vmem:[%s2 + $0x8] sm:$0xff]
        %v238 = vld [vmem:[%s2 + $0x10] sm:$0xff]
        %v239 = vld [vmem:[%s2 + $0x18] sm:$0xff]
        %v240 = vld [vmem:[%s2 + $0x20] sm:$0xff]
        %v241 = vld [vmem:[%s2 + $0x28] sm:$0xff]
        %v242 = vld [vmem:[%s2 + $0x30] sm:$0xff]
        %v243 = vld [vmem:[%s2 + $0x38] sm:$0xff]
        %v244 = vld [vmem:[%s2 + $0x40] sm:$0xff]
        %v245 = vld [vmem:[%s2 + $0x48] sm:$0xff]
        %v246 = vld [vmem:[%s2 + $0x50] sm:$0xff]
        %v247 = vld [vmem:[%s2 + $0x58] sm:$0xff]
        %v248 = vld [vmem:[%s2 + $0x60] sm:$0xff]
        %v249 = vld [vmem:[%s2 + $0x68] sm:$0xff]
        %v250 = vld [vmem:[%s2 + $0x70] sm:$0xff]
        %v251 = vld [vmem:[%s2 + $0x78] sm:$0xff]
        %v252 = vld [vmem:[%s2 + $0x80] sm:$0xff]
        %v253 = vld [vmem:[%s2 + $0x88] sm:$0xff]
        %v254 = vld [vmem:[%s2 + $0x90] sm:$0xff]
        %v255 = vld [vmem:[%s2 + $0x98] sm:$0xff]
        %v256 = vld [vmem:[%s2 + $0xa0] sm:$0xff]
        %v257 = vld [vmem:[%s2 + $0xa8] sm:$0xff]
        %v258 = vld [vmem:[%s2 + $0xb0] sm:$0xff]
        %v259 = vld [vmem:[%s2 + $0xb8] sm:$0xff]
        %v260 = vld [vmem:[%s2 + $0xc0] sm:$0xff]
        %v261 = vld [vmem:[%s2 + $0xc8] sm:$0xff]
        %v262 = vld [vmem:[%s2 + $0xd0] sm:$0xff]
        %v263 = vld [vmem:[%s2 + $0xd8] sm:$0xff]
        %v264 = vld [vmem:[%s2 + $0xe0] sm:$0xff]
        %v265 = vld [vmem:[%s2 + $0xe8] sm:$0xff]
        %v266 = vld [vmem:[%s2 + $0xf0] sm:$0xff]
        %v267 = vld [vmem:[%s2 + $0xf8] sm:$0xff]
        %vm268 = vcmask 64512
        %v270 = vsel %vm268, %v236, 0
        %v273 = vsel %vm268, %v237, 0
        %v276 = vsel %vm268, %v238, 0
        %v279 = vsel %vm268, %v239, 0
        %v282 = vsel %vm268, %v240, 0
        %v285 = vsel %vm268, %v241, 0
        %v288 = vsel %vm268, %v242, 0
        %v291 = vsel %vm268, %v243, 0
        %v294 = vsel %vm268, %v244, 0
        %v297 = vsel %vm268, %v245, 0
        %v300 = vsel %vm268, %v246, 0
        %v303 = vsel %vm268, %v247, 0
        %v306 = vsel %vm268, %v248, 0
        %v309 = vsel %vm268, %v249, 0
        %v312 = vsel %vm268, %v250, 0
        %v315 = vsel %vm268, %v251, 0
        %v318 = vsel %vm268, %v252, 0
        %v321 = vsel %vm268, %v253, 0
        %v324 = vsel %vm268, %v254, 0
        %v327 = vsel %vm268, %v255, 0
        %v330 = vsel %vm268, %v256, 0
        %v333 = vsel %vm268, %v257, 0
        %v336 = vsel %vm268, %v258, 0
        %v339 = vsel %vm268, %v259, 0
        %v342 = vsel %vm268, %v260, 0
        %v345 = vsel %vm268, %v261, 0
        %v348 = vsel %vm268, %v262, 0
        %v351 = vsel %vm268, %v263, 0
        %v354 = vsel %vm268, %v264, 0
        %v357 = vsel %vm268, %v265, 0
        %v360 = vsel %vm268, %v266, 0
        %v363 = vsel %vm268, %v267, 0
        %365 = vmatpush.msra.mxu0 0.0
        %366 = vmatpush.msra.mxu0 0.0
        %367 = vmatpush.msra.mxu0 0.0
        %368 = vmatpush.msra.mxu0 0.0
        %369 = vmatpush.msra.mxu0 0.0
        %370 = vmatpush.msra.mxu0 0.0
        %371 = vmatpush.msra.mxu0 0.0
        %372 = vmatpush.msra.mxu0 0.0
        %373 = vmatpush.msra.mxu0 0.0
        %374 = vmatpush.msra.mxu0 0.0
        %375 = vmatpush.msra.mxu0 0.0
        %376 = vmatpush.msra.mxu0 0.0
        %377 = vmatpush.msra.mxu0 0.0
        %378 = vmatpush.msra.mxu0 0.0
        %379 = vmatpush.msra.mxu0 0.0
        %380 = vmatpush.msra.mxu0 %v235
        %381 = vmatmul.f32.gmra.mxu0 %v270
        %v382 = vpop.f32.mrf.mxu0
        %v383 = vadd.f32 0.0, %v382
        %384 = vmatmul.f32.gmra.mxu0 %v273
        %v385 = vpop.f32.mrf.mxu0
        %v386 = vadd.f32 0.0, %v385
        %387 = vmatmul.f32.gmra.mxu0 %v276
        %v388 = vpop.f32.mrf.mxu0
        %v389 = vadd.f32 0.0, %v388
        %390 = vmatmul.f32.gmra.mxu0 %v279
        %v391 = vpop.f32.mrf.mxu0
        %v392 = vadd.f32 0.0, %v391
        %393 = vmatmul.f32.gmra.mxu0 %v282
        %v394 = vpop.f32.mrf.mxu0
        %v395 = vadd.f32 0.0, %v394
        %396 = vmatmul.f32.gmra.mxu0 %v285
        %v397 = vpop.f32.mrf.mxu0
        %v398 = vadd.f32 0.0, %v397
        %399 = vmatmul.f32.gmra.mxu0 %v288
        %v400 = vpop.f32.mrf.mxu0
        %v401 = vadd.f32 0.0, %v400
        %402 = vmatmul.f32.gmra.mxu0 %v291
        %v403 = vpop.f32.mrf.mxu0
        %v404 = vadd.f32 0.0, %v403
        %405 = vmatmul.f32.gmra.mxu0 %v294
        %v406 = vpop.f32.mrf.mxu0
        %v407 = vadd.f32 0.0, %v406
        %408 = vmatmul.f32.gmra.mxu0 %v297
        %v409 = vpop.f32.mrf.mxu0
        %v410 = vadd.f32 0.0, %v409
        %411 = vmatmul.f32.gmra.mxu0 %v300
        %v412 = vpop.f32.mrf.mxu0
        %v413 = vadd.f32 0.0, %v412
        %414 = vmatmul.f32.gmra.mxu0 %v303
        %v415 = vpop.f32.mrf.mxu0
        %v416 = vadd.f32 0.0, %v415
        %417 = vmatmul.f32.gmra.mxu0 %v306
        %v418 = vpop.f32.mrf.mxu0
        %v419 = vadd.f32 0.0, %v418
        %420 = vmatmul.f32.gmra.mxu0 %v309
        %v421 = vpop.f32.mrf.mxu0
        %v422 = vadd.f32 0.0, %v421
        %423 = vmatmul.f32.gmra.mxu0 %v312
        %v424 = vpop.f32.mrf.mxu0
        %v425 = vadd.f32 0.0, %v424
        %426 = vmatmul.f32.gmra.mxu0 %v315
        %v427 = vpop.f32.mrf.mxu0
        %v428 = vadd.f32 0.0, %v427
        %429 = vmatmul.f32.gmra.mxu0 %v318
        %v430 = vpop.f32.mrf.mxu0
        %v431 = vadd.f32 0.0, %v430
        %432 = vmatmul.f32.gmra.mxu0 %v321
        %v433 = vpop.f32.mrf.mxu0
        %v434 = vadd.f32 0.0, %v433
        %435 = vmatmul.f32.gmra.mxu0 %v324
        %v436 = vpop.f32.mrf.mxu0
        %v437 = vadd.f32 0.0, %v436
        %438 = vmatmul.f32.gmra.mxu0 %v327
        %v439 = vpop.f32.mrf.mxu0
        %v440 = vadd.f32 0.0, %v439
        %441 = vmatmul.f32.gmra.mxu0 %v330
        %v442 = vpop.f32.mrf.mxu0
        %v443 = vadd.f32 0.0, %v442
        %444 = vmatmul.f32.gmra.mxu0 %v333
        %v445 = vpop.f32.mrf.mxu0
        %v446 = vadd.f32 0.0, %v445
        %447 = vmatmul.f32.gmra.mxu0 %v336
        %v448 = vpop.f32.mrf.mxu0
        %v449 = vadd.f32 0.0, %v448
        %450 = vmatmul.f32.gmra.mxu0 %v339
        %v451 = vpop.f32.mrf.mxu0
        %v452 = vadd.f32 0.0, %v451
        %453 = vmatmul.f32.gmra.mxu0 %v342
        %v454 = vpop.f32.mrf.mxu0
        %v455 = vadd.f32 0.0, %v454
        %456 = vmatmul.f32.gmra.mxu0 %v345
        %v457 = vpop.f32.mrf.mxu0
        %v458 = vadd.f32 0.0, %v457
        %459 = vmatmul.f32.gmra.mxu0 %v348
        %v460 = vpop.f32.mrf.mxu0
        %v461 = vadd.f32 0.0, %v460
        %462 = vmatmul.f32.gmra.mxu0 %v351
        %v463 = vpop.f32.mrf.mxu0
        %v464 = vadd.f32 0.0, %v463
        %465 = vmatmul.f32.gmra.mxu0 %v354
        %v466 = vpop.f32.mrf.mxu0
        %v467 = vadd.f32 0.0, %v466
        %468 = vmatmul.f32.gmra.mxu0 %v357
        %v469 = vpop.f32.mrf.mxu0
        %v470 = vadd.f32 0.0, %v469
        %471 = vmatmul.f32.gmra.mxu0 %v360
        %v472 = vpop.f32.mrf.mxu0
        %v473 = vadd.f32 0.0, %v472
        %474 = vmatmul.f32.gmra.mxu0 %v363
        %v475 = vpop.f32.mrf.mxu0
        %v476 = vadd.f32 0.0, %v475
        %477 = vdwg.mxu0
        %478 = vxpose.xlu0.b32.start [1/16] %v235, 128
        %479 = vxpose.xlu0.b32.cont [2/16] 0.0, 128
        %480 = vxpose.xlu0.b32.cont [3/16] 0.0, 128
        %481 = vxpose.xlu0.b32.cont [4/16] 0.0, 128
        %482 = vxpose.xlu0.b32.cont [5/16] 0.0, 128
        %483 = vxpose.xlu0.b32.cont [6/16] 0.0, 128
        %484 = vxpose.xlu0.b32.cont [7/16] 0.0, 128
        %485 = vxpose.xlu0.b32.cont [8/16] 0.0, 128
        %486 = vxpose.xlu0.b32.cont [9/16] 0.0, 128
        %487 = vxpose.xlu0.b32.cont [10/16] 0.0, 128
        %488 = vxpose.xlu0.b32.cont [11/16] 0.0, 128
        %489 = vxpose.xlu0.b32.cont [12/16] 0.0, 128
        %490 = vxpose.xlu0.b32.cont [13/16] 0.0, 128
        %491 = vxpose.xlu0.b32.cont [14/16] 0.0, 128
        %492 = vxpose.xlu0.b32.cont [15/16] 0.0, 128
        %493 = vxpose.xlu0.b32.end [16/16] 0.0, 128
        %v494 = vpop.trf.xlu0
        %v495 = vpop.trf.xlu0
        %v496 = vpop.trf.xlu0
        %v497 = vpop.trf.xlu0
        %v498 = vpop.trf.xlu0
        %v499 = vpop.trf.xlu0
        %v500 = vpop.trf.xlu0
        %v501 = vpop.trf.xlu0
        %v502 = vpop.trf.xlu0
        %v503 = vpop.trf.xlu0
        %v504 = vpop.trf.xlu0
        %v505 = vpop.trf.xlu0
        %v506 = vpop.trf.xlu0
        %v507 = vpop.trf.xlu0
        %v508 = vpop.trf.xlu0
        %v509 = vpop.trf.xlu0
        %v510 = vld [vmem:[%s1] sm:$0xff]
        %v511 = vld [vmem:[%s1 + $0x8] sm:$0xff]
        %v512 = vld [vmem:[%s1 + $0x10] sm:$0xff]
        %v513 = vld [vmem:[%s1 + $0x18] sm:$0xff]
        %v515 = vsel %vm268, %v494, 0
        %v518 = vsel %vm268, %v495, 0
        %520 = vmatpush.msra.mxu0 0.0
        %521 = vmatpush.msra.mxu0 0.0
        %522 = vmatpush.msra.mxu0 0.0
        %523 = vmatpush.msra.mxu0 0.0
        %524 = vmatpush.msra.mxu0 0.0
        %525 = vmatpush.msra.mxu0 0.0
        %526 = vmatpush.msra.mxu0 0.0
        %527 = vmatpush.msra.mxu0 0.0
        %528 = vmatpush.msra.mxu0 0.0
        %529 = vmatpush.msra.mxu0 0.0
        %530 = vmatpush.msra.mxu0 0.0
        %531 = vmatpush.msra.mxu0 0.0
        %532 = vmatpush.msra.mxu0 0.0
        %533 = vmatpush.msra.mxu0 0.0
        %534 = vmatpush.msra.mxu0 0.0
        %535 = vmatpush.msra.mxu0 %v510
        %536 = vmatmul.f32.gmra.mxu0 %v515
        %v537 = vpop.f32.mrf.mxu0
        %v538 = vadd.f32 0.0, %v537
        %539 = vmatmul.f32.gmra.mxu0 %v518
        %v540 = vpop.f32.mrf.mxu0
        %v541 = vadd.f32 0.0, %v540
        %542 = vdwg.mxu0
        %543 = vmatpush.msra.mxu0 0.0
        %544 = vmatpush.msra.mxu0 0.0
        %545 = vmatpush.msra.mxu0 0.0
        %546 = vmatpush.msra.mxu0 0.0
        %547 = vmatpush.msra.mxu0 0.0
        %548 = vmatpush.msra.mxu0 0.0
        %549 = vmatpush.msra.mxu0 0.0
        %550 = vmatpush.msra.mxu0 0.0
        %551 = vmatpush.msra.mxu0 0.0
        %552 = vmatpush.msra.mxu0 0.0
        %553 = vmatpush.msra.mxu0 0.0
        %554 = vmatpush.msra.mxu0 0.0
        %555 = vmatpush.msra.mxu0 0.0
        %556 = vmatpush.msra.mxu0 0.0
        %557 = vmatpush.msra.mxu0 0.0
        %558 = vmatpush.msra.mxu0 %v511
        %559 = vmatmul.f32.gmra.mxu0 %v515
        %v560 = vpop.f32.mrf.mxu0
        %v561 = vadd.f32 0.0, %v560
        %562 = vmatmul.f32.gmra.mxu0 %v518
        %v563 = vpop.f32.mrf.mxu0
        %v564 = vadd.f32 0.0, %v563
        %565 = vdwg.mxu0
        %566 = vmatpush.msra.mxu0 0.0
        %567 = vmatpush.msra.mxu0 0.0
        %568 = vmatpush.msra.mxu0 0.0
        %569 = vmatpush.msra.mxu0 0.0
        %570 = vmatpush.msra.mxu0 0.0
        %571 = vmatpush.msra.mxu0 0.0
        %572 = vmatpush.msra.mxu0 0.0
        %573 = vmatpush.msra.mxu0 0.0
        %574 = vmatpush.msra.mxu0 0.0
        %575 = vmatpush.msra.mxu0 0.0
        %576 = vmatpush.msra.mxu0 0.0
        %577 = vmatpush.msra.mxu0 0.0
        %578 = vmatpush.msra.mxu0 0.0
        %579 = vmatpush.msra.mxu0 0.0
        %580 = vmatpush.msra.mxu0 0.0
        %581 = vmatpush.msra.mxu0 %v512
        %582 = vmatmul.f32.gmra.mxu0 %v515
        %v583 = vpop.f32.mrf.mxu0
        %v584 = vadd.f32 0.0, %v583
        %585 = vmatmul.f32.gmra.mxu0 %v518
        %v586 = vpop.f32.mrf.mxu0
        %v587 = vadd.f32 0.0, %v586
        %588 = vdwg.mxu0
        %589 = vmatpush.msra.mxu0 0.0
        %590 = vmatpush.msra.mxu0 0.0
        %591 = vmatpush.msra.mxu0 0.0
        %592 = vmatpush.msra.mxu0 0.0
        %593 = vmatpush.msra.mxu0 0.0
        %594 = vmatpush.msra.mxu0 0.0
        %595 = vmatpush.msra.mxu0 0.0
        %596 = vmatpush.msra.mxu0 0.0
        %597 = vmatpush.msra.mxu0 0.0
        %598 = vmatpush.msra.mxu0 0.0
        %599 = vmatpush.msra.mxu0 0.0
        %600 = vmatpush.msra.mxu0 0.0
        %601 = vmatpush.msra.mxu0 0.0
        %602 = vmatpush.msra.mxu0 0.0
        %603 = vmatpush.msra.mxu0 0.0
        %604 = vmatpush.msra.mxu0 %v513
        %605 = vmatmul.f32.gmra.mxu0 %v515
        %v606 = vpop.f32.mrf.mxu0
        %v607 = vadd.f32 0.0, %v606
        %608 = vmatmul.f32.gmra.mxu0 %v518
        %v609 = vpop.f32.mrf.mxu0
        %v610 = vadd.f32 0.0, %v609
        %611 = vdwg.mxu0
        %v612 = vpack.c.bf16 %v538, %v538
        %v613 = vpack.c.bf16 %v541, %v541
        %v614 = vpack.c.bf16 %v561, %v561
        %v615 = vpack.c.bf16 %v564, %v564
        %v616 = vpack.c.bf16 %v584, %v584
        %v617 = vpack.c.bf16 %v587, %v587
        %v618 = vpack.c.bf16 %v607, %v607
        %v619 = vpack.c.bf16 %v610, %v610
        %v620 = vpack.c.bf16 %v383, %v383
        %v621 = vpack.c.bf16 %v386, %v386
        %v622 = vpack.c.bf16 %v389, %v389
        %v623 = vpack.c.bf16 %v392, %v392
        %v624 = vpack.c.bf16 %v395, %v395
        %v625 = vpack.c.bf16 %v398, %v398
        %v626 = vpack.c.bf16 %v401, %v401
        %v627 = vpack.c.bf16 %v404, %v404
        %v628 = vpack.c.bf16 %v407, %v407
        %v629 = vpack.c.bf16 %v410, %v410
        %v630 = vpack.c.bf16 %v413, %v413
        %v631 = vpack.c.bf16 %v416, %v416
        %v632 = vpack.c.bf16 %v419, %v419
        %v633 = vpack.c.bf16 %v422, %v422
        %v634 = vpack.c.bf16 %v425, %v425
        %v635 = vpack.c.bf16 %v428, %v428
        %v636 = vpack.c.bf16 %v431, %v431
        %v637 = vpack.c.bf16 %v434, %v434
        %v638 = vpack.c.bf16 %v437, %v437
        %v639 = vpack.c.bf16 %v440, %v440
        %v640 = vpack.c.bf16 %v443, %v443
        %v641 = vpack.c.bf16 %v446, %v446
        %v642 = vpack.c.bf16 %v449, %v449
        %v643 = vpack.c.bf16 %v452, %v452
        %v644 = vpack.c.bf16 %v455, %v455
        %v645 = vpack.c.bf16 %v458, %v458
        %v646 = vpack.c.bf16 %v461, %v461
        %v647 = vpack.c.bf16 %v464, %v464
        %v648 = vpack.c.bf16 %v467, %v467
        %v649 = vpack.c.bf16 %v470, %v470
        %v650 = vpack.c.bf16 %v473, %v473
        %v651 = vpack.c.bf16 %v476, %v476
        %v654 = vunpack.c.l.b16 %v612
        %v655 = vunpack.c.l.b16 %v613
        %v656 = vpack.c.b16 %v655, %v654
        %v661 = vunpack.c.l.b16 %v620
        %v662 = vunpack.c.l.b16 %v621
        %v663 = vunpack.c.l.b16 %v622
        %v664 = vunpack.c.l.b16 %v623
        %v665 = vpack.c.b16 %v662, %v661
        %v666 = vpack.c.b16 %v664, %v663
        %vm669 = vcmask 261120
        %v671 = vsel %vm669, %v656, 0
        %673 = vmatpush.bf16.msra.mxu0 0
        %674 = vmatpush.bf16.msra.mxu0 0
        %675 = vmatpush.bf16.msra.mxu0 0
        %676 = vmatpush.bf16.msra.mxu0 0
        %677 = vmatpush.bf16.msra.mxu0 0
        %678 = vmatpush.bf16.msra.mxu0 0
        %679 = vmatpush.bf16.msra.mxu0 %v666
        %680 = vmatpush.bf16.msra.mxu0 %v665
        %681 = vmatmul.bf16.gmra.mxu0 %v671
        %v682 = vpop.f32.mrf.mxu0
        %v683 = vadd.f32 0.0, %v682
        %v684 = vpop.f32.mrf.mxu0
        %v685 = vadd.f32 0.0, %v684
        %686 = vdwg.mxu0
        %v689 = vunpack.c.l.b16 %v614
        %v690 = vunpack.c.l.b16 %v615
        %v691 = vpack.c.b16 %v690, %v689
        %v696 = vunpack.c.l.b16 %v624
        %v697 = vunpack.c.l.b16 %v625
        %v698 = vunpack.c.l.b16 %v626
        %v699 = vunpack.c.l.b16 %v627
        %v700 = vpack.c.b16 %v697, %v696
        %v701 = vpack.c.b16 %v699, %v698
        %v705 = vsel %vm669, %v691, 0
        %707 = vmatpush.bf16.msra.mxu0 0
        %708 = vmatpush.bf16.msra.mxu0 0
        %709 = vmatpush.bf16.msra.mxu0 0
        %710 = vmatpush.bf16.msra.mxu0 0
        %711 = vmatpush.bf16.msra.mxu0 0
        %712 = vmatpush.bf16.msra.mxu0 0
        %713 = vmatpush.bf16.msra.mxu0 %v701
        %714 = vmatpush.bf16.msra.mxu0 %v700
        %715 = vmatmul.bf16.gmra.mxu0 %v705
        %v716 = vpop.f32.mrf.mxu0
        %v717 = vadd.f32 0.0, %v716
        %v718 = vpop.f32.mrf.mxu0
        %v719 = vadd.f32 0.0, %v718
        %720 = vdwg.mxu0
        %v723 = vunpack.c.l.b16 %v616
        %v724 = vunpack.c.l.b16 %v617
        %v725 = vpack.c.b16 %v724, %v723
        %v730 = vunpack.c.l.b16 %v628
        %v731 = vunpack.c.l.b16 %v629
        %v732 = vunpack.c.l.b16 %v630
        %v733 = vunpack.c.l.b16 %v631
        %v734 = vpack.c.b16 %v731, %v730
        %v735 = vpack.c.b16 %v733, %v732
        %v739 = vsel %vm669, %v725, 0
        %741 = vmatpush.bf16.msra.mxu0 0
        %742 = vmatpush.bf16.msra.mxu0 0
        %743 = vmatpush.bf16.msra.mxu0 0
        %744 = vmatpush.bf16.msra.mxu0 0
        %745 = vmatpush.bf16.msra.mxu0 0
        %746 = vmatpush.bf16.msra.mxu0 0
        %747 = vmatpush.bf16.msra.mxu0 %v735
        %748 = vmatpush.bf16.msra.mxu0 %v734
        %749 = vmatmul.bf16.gmra.mxu0 %v739
        %v750 = vpop.f32.mrf.mxu0
        %v751 = vadd.f32 0.0, %v750
        %v752 = vpop.f32.mrf.mxu0
        %v753 = vadd.f32 0.0, %v752
        %754 = vdwg.mxu0
        %v757 = vunpack.c.l.b16 %v618
        %v758 = vunpack.c.l.b16 %v619
        %v759 = vpack.c.b16 %v758, %v757
        %v764 = vunpack.c.l.b16 %v632
        %v765 = vunpack.c.l.b16 %v633
        %v766 = vunpack.c.l.b16 %v634
        %v767 = vunpack.c.l.b16 %v635
        %v768 = vpack.c.b16 %v765, %v764
        %v769 = vpack.c.b16 %v767, %v766
        %v773 = vsel %vm669, %v759, 0
        %775 = vmatpush.bf16.msra.mxu0 0
        %776 = vmatpush.bf16.msra.mxu0 0
        %777 = vmatpush.bf16.msra.mxu0 0
        %778 = vmatpush.bf16.msra.mxu0 0
        %779 = vmatpush.bf16.msra.mxu0 0
        %780 = vmatpush.bf16.msra.mxu0 0
        %781 = vmatpush.bf16.msra.mxu0 %v769
        %782 = vmatpush.bf16.msra.mxu0 %v768
        %783 = vmatmul.bf16.gmra.mxu0 %v773
        %v784 = vpop.f32.mrf.mxu0
        %v785 = vadd.f32 0.0, %v784
        %v786 = vpop.f32.mrf.mxu0
        %v787 = vadd.f32 0.0, %v786
        %788 = vdwg.mxu0
        %vm789 = vcmask 130048
        %v790 = vsel %vm789, %v683, -inf
        %791 = vmax.xlane.f32.xlu0 %v790
        %v792 = vpop.xlane.xlu0 %791
        %v793 = vsel %vm789, %v685, -inf
        %794 = vmax.xlane.f32.xlu0 %v793
        %v795 = vpop.xlane.xlu0 %794
        %v796 = vsel %vm789, %v717, -inf
        %797 = vmax.xlane.f32.xlu0 %v796
        %v798 = vpop.xlane.xlu0 %797
        %v799 = vsel %vm789, %v719, -inf
        %800 = vmax.xlane.f32.xlu0 %v799
        %v801 = vpop.xlane.xlu0 %800
        %v802 = vsel %vm789, %v751, -inf
        %803 = vmax.xlane.f32.xlu0 %v802
        %v804 = vpop.xlane.xlu0 %803
        %v805 = vsel %vm789, %v753, -inf
        %806 = vmax.xlane.f32.xlu0 %v805
        %v807 = vpop.xlane.xlu0 %806
        %v808 = vsel %vm789, %v785, -inf
        %809 = vmax.xlane.f32.xlu0 %v808
        %v810 = vpop.xlane.xlu0 %809
        %v811 = vsel %vm789, %v787, -inf
        %812 = vmax.xlane.f32.xlu0 %v811
        %v813 = vpop.xlane.xlu0 %812
        %v814 = vsub.f32 %v683, %v792
        %v815 = vsub.f32 %v685, %v795
        %v816 = vsub.f32 %v717, %v798
        %v817 = vsub.f32 %v719, %v801
        %v818 = vsub.f32 %v751, %v804
        %v819 = vsub.f32 %v753, %v807
        %v820 = vsub.f32 %v785, %v810
        %v821 = vsub.f32 %v787, %v813
        %v822 = vmul.f32 %v814, 1.442695
        %v823 = vpow.pop %v822
        %v824 = vmul.f32 %v815, 1.442695
        %v825 = vpow.pop %v824
        %v826 = vmul.f32 %v816, 1.442695
        %v827 = vpow.pop %v826
        %v828 = vmul.f32 %v817, 1.442695
        %v829 = vpow.pop %v828
        %v830 = vmul.f32 %v818, 1.442695
        %v831 = vpow.pop %v830
        %v832 = vmul.f32 %v819, 1.442695
        %v833 = vpow.pop %v832
        %v834 = vmul.f32 %v820, 1.442695
        %v835 = vpow.pop %v834
        %v836 = vmul.f32 %v821, 1.442695
        %v837 = vpow.pop %v836
        %v838 = vsel %vm789, %v823, 0.0
        %839 = vadd.xlane.f32.xlu0 %v838
        %v840 = vpop.xlane.xlu0 %839
        %v841 = vsel %vm789, %v825, 0.0
        %842 = vadd.xlane.f32.xlu0 %v841
        %v843 = vpop.xlane.xlu0 %842
        %v844 = vsel %vm789, %v827, 0.0
        %845 = vadd.xlane.f32.xlu0 %v844
        %v846 = vpop.xlane.xlu0 %845
        %v847 = vsel %vm789, %v829, 0.0
        %848 = vadd.xlane.f32.xlu0 %v847
        %v849 = vpop.xlane.xlu0 %848
        %v850 = vsel %vm789, %v831, 0.0
        %851 = vadd.xlane.f32.xlu0 %v850
        %v852 = vpop.xlane.xlu0 %851
        %v853 = vsel %vm789, %v833, 0.0
        %854 = vadd.xlane.f32.xlu0 %v853
        %v855 = vpop.xlane.xlu0 %854
        %v856 = vsel %vm789, %v835, 0.0
        %857 = vadd.xlane.f32.xlu0 %v856
        %v858 = vpop.xlane.xlu0 %857
        %v859 = vsel %vm789, %v837, 0.0
        %860 = vadd.xlane.f32.xlu0 %v859
        %v861 = vpop.xlane.xlu0 %860
        %v862 = vrcp.pop %v840
        %v863 = vrcp.pop %v843
        %v864 = vrcp.pop %v846
        %v865 = vrcp.pop %v849
        %v866 = vrcp.pop %v852
        %v867 = vrcp.pop %v855
        %v868 = vrcp.pop %v858
        %v869 = vrcp.pop %v861
        %v870 = vmul.f32 %v823, %v862
        %v871 = vmul.f32 %v825, %v863
        %v872 = vmul.f32 %v827, %v864
        %v873 = vmul.f32 %v829, %v865
        %v874 = vmul.f32 %v831, %v866
        %v875 = vmul.f32 %v833, %v867
        %v876 = vmul.f32 %v835, %v868
        %v877 = vmul.f32 %v837, %v869
        %v878 = vpack.c.bf16 %v870, %v870
        %v879 = vpack.c.bf16 %v871, %v871
        %v880 = vpack.c.bf16 %v872, %v872
        %v881 = vpack.c.bf16 %v873, %v873
        %v882 = vpack.c.bf16 %v874, %v874
        %v883 = vpack.c.bf16 %v875, %v875
        %v884 = vpack.c.bf16 %v876, %v876
        %v885 = vpack.c.bf16 %v877, %v877
        %v890 = vunpack.c.l.b16 %v636
        %v891 = vunpack.c.l.b16 %v637
        %v892 = vunpack.c.l.b16 %v638
        %v893 = vunpack.c.l.b16 %v639
        %v894 = vpack.c.b16 %v891, %v890
        %v895 = vpack.c.b16 %v893, %v892
        %v898 = vunpack.c.l.b16 %v878
        %v899 = vunpack.c.l.b16 %v879
        %v900 = vpack.c.b16 %v899, %v898
        %v902 = vsel %vm789, %v894, 0
        %v905 = vsel %vm789, %v895, 0
        %v908 = vsel %vm789, %v900, 0
        %910 = vmatpush.bf16.xpose.msra.mxu0 0
        %911 = vmatpush.bf16.xpose.msra.mxu0 0
        %912 = vmatpush.bf16.xpose.msra.mxu0 0
        %913 = vmatpush.bf16.xpose.msra.mxu0 0
        %914 = vmatpush.bf16.xpose.msra.mxu0 0
        %915 = vmatpush.bf16.xpose.msra.mxu0 0
        %916 = vmatpush.bf16.xpose.msra.mxu0 0
        %917 = vmatpush.bf16.xpose.msra.mxu0 %v908
        %918 = vmatmul.bf16.gmra.mxu0 %v902
        %v919 = vpop.f32.mrf.mxu0
        %v920 = vadd.f32 0.0, %v919
        %v921 = vpop.f32.mrf.mxu0
        %v922 = vadd.f32 0.0, %v921
        %923 = vmatmul.bf16.gmra.mxu0 %v905
        %v924 = vpop.f32.mrf.mxu0
        %v925 = vadd.f32 0.0, %v924
        %v926 = vpop.f32.mrf.mxu0
        %v927 = vadd.f32 0.0, %v926
        %928 = vdwg.mxu0
        %v933 = vunpack.c.l.b16 %v640
        %v934 = vunpack.c.l.b16 %v641
        %v935 = vunpack.c.l.b16 %v642
        %v936 = vunpack.c.l.b16 %v643
        %v937 = vpack.c.b16 %v934, %v933
        %v938 = vpack.c.b16 %v936, %v935
        %v941 = vunpack.c.l.b16 %v880
        %v942 = vunpack.c.l.b16 %v881
        %v943 = vpack.c.b16 %v942, %v941
        %v945 = vsel %vm789, %v937, 0
        %v948 = vsel %vm789, %v938, 0
        %v951 = vsel %vm789, %v943, 0
        %953 = vmatpush.bf16.xpose.msra.mxu0 0
        %954 = vmatpush.bf16.xpose.msra.mxu0 0
        %955 = vmatpush.bf16.xpose.msra.mxu0 0
        %956 = vmatpush.bf16.xpose.msra.mxu0 0
        %957 = vmatpush.bf16.xpose.msra.mxu0 0
        %958 = vmatpush.bf16.xpose.msra.mxu0 0
        %959 = vmatpush.bf16.xpose.msra.mxu0 0
        %960 = vmatpush.bf16.xpose.msra.mxu0 %v951
        %961 = vmatmul.bf16.gmra.mxu0 %v945
        %v962 = vpop.f32.mrf.mxu0
        %v963 = vadd.f32 0.0, %v962
        %v964 = vpop.f32.mrf.mxu0
        %v965 = vadd.f32 0.0, %v964
        %966 = vmatmul.bf16.gmra.mxu0 %v948
        %v967 = vpop.f32.mrf.mxu0
        %v968 = vadd.f32 0.0, %v967
        %v969 = vpop.f32.mrf.mxu0
        %v970 = vadd.f32 0.0, %v969
        %971 = vdwg.mxu0
        %v976 = vunpack.c.l.b16 %v644
        %v977 = vunpack.c.l.b16 %v645
        %v978 = vunpack.c.l.b16 %v646
        %v979 = vunpack.c.l.b16 %v647
        %v980 = vpack.c.b16 %v977, %v976
        %v981 = vpack.c.b16 %v979, %v978
        %v984 = vunpack.c.l.b16 %v882
        %v985 = vunpack.c.l.b16 %v883
        %v986 = vpack.c.b16 %v985, %v984
        %v988 = vsel %vm789, %v980, 0
        %v991 = vsel %vm789, %v981, 0
        %v994 = vsel %vm789, %v986, 0
        %996 = vmatpush.bf16.xpose.msra.mxu0 0
        %997 = vmatpush.bf16.xpose.msra.mxu0 0
        %998 = vmatpush.bf16.xpose.msra.mxu0 0
        %999 = vmatpush.bf16.xpose.msra.mxu0 0
        %1000 = vmatpush.bf16.xpose.msra.mxu0 0
        %1001 = vmatpush.bf16.xpose.msra.mxu0 0
        %1002 = vmatpush.bf16.xpose.msra.mxu0 0
        %1003 = vmatpush.bf16.xpose.msra.mxu0 %v994
        %1004 = vmatmul.bf16.gmra.mxu0 %v988
        %v1005 = vpop.f32.mrf.mxu0
        %v1006 = vadd.f32 0.0, %v1005
        %v1007 = vpop.f32.mrf.mxu0
        %v1008 = vadd.f32 0.0, %v1007
        %1009 = vmatmul.bf16.gmra.mxu0 %v991
        %v1010 = vpop.f32.mrf.mxu0
        %v1011 = vadd.f32 0.0, %v1010
        %v1012 = vpop.f32.mrf.mxu0
        %v1013 = vadd.f32 0.0, %v1012
        %1014 = vdwg.mxu0
        %v1019 = vunpack.c.l.b16 %v648
        %v1020 = vunpack.c.l.b16 %v649
        %v1021 = vunpack.c.l.b16 %v650
        %v1022 = vunpack.c.l.b16 %v651
        %v1023 = vpack.c.b16 %v1020, %v1019
        %v1024 = vpack.c.b16 %v1022, %v1021
        %v1027 = vunpack.c.l.b16 %v884
        %v1028 = vunpack.c.l.b16 %v885
        %v1029 = vpack.c.b16 %v1028, %v1027
        %v1031 = vsel %vm789, %v1023, 0
        %v1034 = vsel %vm789, %v1024, 0
        %v1037 = vsel %vm789, %v1029, 0
        %1039 = vmatpush.bf16.xpose.msra.mxu0 0
        %1040 = vmatpush.bf16.xpose.msra.mxu0 0
        %1041 = vmatpush.bf16.xpose.msra.mxu0 0
        %1042 = vmatpush.bf16.xpose.msra.mxu0 0
        %1043 = vmatpush.bf16.xpose.msra.mxu0 0
        %1044 = vmatpush.bf16.xpose.msra.mxu0 0
        %1045 = vmatpush.bf16.xpose.msra.mxu0 0
        %1046 = vmatpush.bf16.xpose.msra.mxu0 %v1037
        %1047 = vmatmul.bf16.gmra.mxu0 %v1031
        %v1048 = vpop.f32.mrf.mxu0
        %v1049 = vadd.f32 0.0, %v1048
        %v1050 = vpop.f32.mrf.mxu0
        %v1051 = vadd.f32 0.0, %v1050
        %1052 = vmatmul.bf16.gmra.mxu0 %v1034
        %v1053 = vpop.f32.mrf.mxu0
        %v1054 = vadd.f32 0.0, %v1053
        %v1055 = vpop.f32.mrf.mxu0
        %v1056 = vadd.f32 0.0, %v1055
        %1057 = vdwg.mxu0
        %v1058 = vld [vmem:[%s3] sm:$0xff]
        %v1059 = vld [vmem:[%s4] sm:$0xff]
        %1061 = vset.pattern.permute.xlu0 0
        %1062 = vperm.xlu0 %1061, %v1059
        %v1063 = vpop.permute.xlu0 %1062
        %1065 = vmatpush.msra.mxu0 %v1056
        %1066 = vmatpush.msra.mxu0 %v1054
        %1067 = vmatpush.msra.mxu0 %v1051
        %1068 = vmatpush.msra.mxu0 %v1049
        %1069 = vmatpush.msra.mxu0 %v1013
        %1070 = vmatpush.msra.mxu0 %v1011
        %1071 = vmatpush.msra.mxu0 %v1008
        %1072 = vmatpush.msra.mxu0 %v1006
        %1073 = vmatpush.msra.mxu0 %v970
        %1074 = vmatpush.msra.mxu0 %v968
        %1075 = vmatpush.msra.mxu0 %v965
        %1076 = vmatpush.msra.mxu0 %v963
        %1077 = vmatpush.msra.mxu0 %v927
        %1078 = vmatpush.msra.mxu0 %v925
        %1079 = vmatpush.msra.mxu0 %v922
        %1080 = vmatpush.msra.mxu0 %v920
        %1081 = vmatmul.f32.gmra.mxu0 %v1058
        %v1082 = vpop.f32.mrf.mxu0
        %v1083 = vadd.f32 %v1063, %v1082
        %1084 = vdwg.mxu0
        %1085 = vst.msk [vmem:[%s229] sm:$0xff] %vm789, %v1083
        %s1086 = sand.u32 %s151, 1
        %s1087 = scalar_lea.sflag [#allocation3], %s1086
        %s1088 = sand.u32 %s151, 1
        %s1089 = smul.addr %s1088, 8
        %s1090 = scalar_lea.vmem [#allocation2], %s1089
        // Predicated region
        $region41: #{tpu_custom_call.1} parent=39 // pred_check
          %p1091 = pneg %p161
        $region42: #{tpu_custom_call.1} parent=39 // pred_check_branch
          %1093 = sbr.rel (%p1091) target = $region44
        $region43: #{tpu_custom_call.1} parent=39 // pred_region
          %1095 = vsyncadd %s1087, 0
          %s1096 = sadd.s32 %s24, %s23
          %s1097 = smul.addr %s1096, 8
          %s1098 = scalar_lea.hbm %s5, %s1097
          %s1100 = sshll.u32 %s1090, 4
          %s1101 = int_to_ptr.vmem [resolvable:$true] %s1100
          %s1102 = sshll.u32 %s1098, 4
          %s1103 = int_to_ptr.hbm [resolvable:$true] %s1102
          %1105 = dma.vmem_to_hbm [thread:$0]  %s1101, 128, %s1103, %s1087
        $region44: #{tpu_custom_call.1} parent=39 // pred_fallthru
          _
      $region40: #{tpu_custom_call.1} parent=5 // pred_fallthru
        _
      %p1106 = scmp.le.s32.totalorder 2, %s14
      // Predicated region
      $region45: #{tpu_custom_call.1} parent=5 // pred_check
        %p1107 = pneg %p1106
      $region46: #{tpu_custom_call.1} parent=5 // pred_check_branch
        %1109 = sbr.rel (%p1107) target = $region48
      $region47: #{tpu_custom_call.1} parent=5 // pred_region
        %s1110 = ssub.s32 %s14, 2
        // Predicated region
        $region49: #{tpu_custom_call.1} parent=47 // pred_check
          %p1111 = pneg %p167
        $region50: #{tpu_custom_call.1} parent=47 // pred_check_branch
          %1113 = sbr.rel (%p1111) target = $region52
        $region51: #{tpu_custom_call.1} parent=47 // pred_region
          %s1114 = sand.u32 %s152, 1
          %s1115 = scalar_lea.sflag [#allocation3], %s1114
          %s1116 = sand.u32 %s152, 1
          %s1117 = smul.addr %s1116, 8
          %s1118 = scalar_lea.vmem [#allocation2], %s1117
          %1120 = dma.done %s1115, 128
        $region52: #{tpu_custom_call.1} parent=47 // pred_fallthru
          _
      $region48: #{tpu_custom_call.1} parent=5 // pred_fallthru
        _
    $region6: #{tpu_custom_call.1} parent=1 // loop_footer
      %s18 = sadd.s32 1, %s14
    $region7: #{tpu_custom_call.1} parent=1 // loop_footer_branch
      %13 = sbr.rel target = $region3
    $region8: #{tpu_custom_call.1} parent=1 // loop_exit
      _
    %1121 = vsyncpa [#allocation3], 1
    %s1122 = scalar_lea.sflag [#allocation3], 1
    %1123 = vsyncpa %s1122, 1

</llo_original>
